<compile_context>
chip_gen: v5e
topology: v5e:2x2
jax: 0.10.0
libtpu: 0.0.40
codegen_flags: <defaults>
</compile_context>

<pallas_src>
import jax
import jax.numpy as jnp
from jax.experimental import pallas as pl
from jax.experimental.pallas import tpu as pltpu


# ----------------------------- kernel body ---------------------------------

def _make_prompt_kernel(class_tile: int, n_ctx: int, dim: int,
                        ctx_is_shared: bool, prefix_is_shared: bool):
    def prompt_kernel(ctx_ref, prefix_ref, suffix_ref, out_ref):
        # ctx_ref    : (n_ctx, dim) if shared else (class_tile, n_ctx, dim)
        # prefix_ref : (1, dim)     if shared else (class_tile, 1, dim)
        # suffix_ref : (class_tile, suf_len, dim)
        # out_ref    : (class_tile, 1 + n_ctx + suf_len, dim)
        if ctx_is_shared:
            ctx_blk = jnp.broadcast_to(ctx_ref[...][None, :, :],
                                       (class_tile, n_ctx, dim))
        else:
            ctx_blk = ctx_ref[...]
        if prefix_is_shared:
            pre_blk = jnp.broadcast_to(prefix_ref[...][None, :, :],
                                       (class_tile, 1, dim))
        else:
            pre_blk = prefix_ref[...]
        # Single unmasked full-block store (no sublane-misaligned partial writes).
        out_ref[...] = jnp.concatenate(
            [pre_blk.astype(out_ref.dtype),
             ctx_blk.astype(out_ref.dtype),
             suffix_ref[...].astype(out_ref.dtype)],
            axis=1,
        )

    return prompt_kernel


# --------------------------- sizing helpers ---------------------------------

def _round_up(x: int, m: int) -> int:
    return ((x + m - 1) // m) * m


def _sublane(dtype) -> int:
    # sublane tile: 8 for 4-byte, 16 for 2-byte, 32 for 1-byte elements
    return max(1, 32 // jnp.dtype(dtype).itemsize)


def _padded_bytes(rows: int, mid: int, dim: int, dtype) -> int:
    """VMEM footprint of a (rows, mid, dim) block, incl. sublane/lane padding."""
    dt = jnp.dtype(dtype)
    return rows * _round_up(mid, _sublane(dt)) * _round_up(dim, 128) * dt.itemsize


def _divisors(n: int):
    ds, i = [], 1
    while i * i <= n:
        if n % i == 0:
            ds.append(i)
            if i != n // i:
                ds.append(n // i)
        i += 1
    return sorted(ds)


def _chip_config():
    """(num_tensorcores, target_block_bytes, vmem_budget, vmem_cap) per chip gen."""
    kind = ""
    try:
        kind = jax.devices()[0].device_kind.lower()
    except Exception:
        pass
    # conservative defaults (unknown chip)
    num_tc, target, budget, cap = 1, 4 << 20, 48 << 20, 96 << 20
    if "v5e" in kind or "v5 lite" in kind or "v5lite" in kind:
        num_tc, target, budget, cap = 1, 3 << 20, 48 << 20, 100 << 20
    elif "v6" in kind:                       # Trillium / v6e: single TC, fast HBM
        num_tc, target, budget, cap = 1, 6 << 20, 64 << 20, 100 << 20
    elif "v7" in kind:                       # v7x: 2 TCs, only 64 MiB VMEM per TC
        num_tc, target, budget, cap = 2, 10 << 20, 40 << 20, 48 << 20
    elif "v4" in kind or "v5" in kind:       # v4 / v5p megacore
        num_tc, target, budget, cap = 2, 8 << 20, 64 << 20, 100 << 20
    try:
        phys = getattr(pltpu.get_tpu_info(), "vmem_capacity_bytes", None)
        if phys:
            cap = min(cap, (int(phys) * 3) // 4)
            budget = min(budget, (int(phys) * 5) // 8)
    except Exception:
        pass
    return num_tc, target, budget, cap


def _pick_class_tile(n_cls, per_class_out_bytes, ws_fn, num_tc, target_bytes,
                     vmem_budget):
    """Largest divisor of n_cls whose output block is <= target and whose
    double-buffered working set fits VMEM; on multi-TC chips, prefer a divisor
    giving a block count that is a multiple of the core count."""
    divs = [d for d in _divisors(n_cls) if ws_fn(d) <= vmem_budget] or [1]
    max_tc = max(1, target_bytes // max(per_class_out_bytes, 1))
    within = [d for d in divs if d <= max_tc] or [min(divs)]
    if num_tc > 1 and n_cls >= 2 * num_tc:
        even = [d for d in within if (n_cls // d) % num_tc == 0]
        if even:
            return max(even)
    return max(within)


# ------------------------------ wrapper -------------------------------------

def _xla_prompts(ctx, prefix3d, suffix, n_cls, out_dtype):
    if ctx.ndim == 2:
        ctx = jnp.broadcast_to(ctx[None, :, :], (n_cls,) + ctx.shape)
    return jnp.concatenate([prefix3d, ctx, suffix], axis=1).astype(out_dtype)


def prompt_learner_forward(ctx, token_prefix, token_suffix, *,
                           class_tile=None, out_dtype=None,
                           prefix_is_shared=False, force_pallas=False,
                           min_pallas_bytes=1 << 20):
    """prompts = concat([prefix, ctx (broadcast if generic), suffix], axis=1).

    ctx:          (n_ctx, dim) generic shared context, or (n_cls, n_ctx, dim) CSC
    token_prefix: (n_cls, 1, dim); if prefix_is_shared, any shape holding the
                  single SOS row (row 0 is used)
    token_suffix: (n_cls, suf_len, dim)
    returns:      (n_cls, 1 + n_ctx + suf_len, dim)
    """
    ctx_is_shared = ctx.ndim == 2
    if ctx_is_shared:
        n_ctx, dim = ctx.shape
    else:
        _, n_ctx, dim = ctx.shape

    n_cls, suf_len, dim_s = token_suffix.shape
    assert dim_s == dim
    if not ctx_is_shared:
        assert ctx.shape[0] == n_cls
    if prefix_is_shared:
        pre_row = jnp.reshape(token_prefix, (-1, dim))[:1]       # (1, dim)
    else:
        assert token_prefix.shape == (n_cls, 1, dim)
        pre_row = None

    total_len = 1 + n_ctx + suf_len
    out_dtype = out_dtype or ctx.dtype
    out_itemsize = jnp.dtype(out_dtype).itemsize
    per_class_out = total_len * dim * out_itemsize
    out_bytes = n_cls * per_class_out

    num_tc, target_bytes, vmem_budget, vmem_cap = _chip_config()

    def ws_bytes(tc):
        # double-buffered pipeline working set for a class_tile of `tc`
        out_b = _padded_bytes(tc, total_len, dim, out_dtype)
        suf_b = _padded_bytes(tc, suf_len, dim, token_suffix.dtype)
        pre_b = _padded_bytes(1 if prefix_is_shared else tc, 1, dim,
                              token_prefix.dtype)
        ctx_b = _padded_bytes(1 if ctx_is_shared else tc, n_ctx, dim, ctx.dtype)
        return 2 * (out_b + suf_b + pre_b + ctx_b)

    if class_tile is None:
        class_tile = _pick_class_tile(n_cls, per_class_out, ws_bytes,
                                      num_tc, target_bytes, vmem_budget)
    else:
        class_tile = max(1, min(int(class_tile), n_cls))
        while n_cls % class_tile != 0:       # keep full blocks; never pad
            class_tile -= 1

    n_blocks = n_cls // class_tile
    block_bytes = class_tile * per_class_out

    # Small problems (launch overhead dominates) or pathological tilings
    # (e.g. large prime n_cls): a plain XLA concat is already at the HBM
    # roofline for this pure copy and adds no extra traffic.
    small = out_bytes < min_pallas_bytes
    pathological = ((block_bytes < (256 << 10) and n_blocks >= 8)
                    or ws_bytes(class_tile) > vmem_cap)
    if (small or pathological) and not force_pallas:
        prefix3d = (jnp.broadcast_to(pre_row[:, None, :], (n_cls, 1, dim))
                    if prefix_is_shared else token_prefix)
        return _xla_prompts(ctx, prefix3d, token_suffix, n_cls, out_dtype)

    vmem_limit = int(min(max(ws_bytes(class_tile) * 5 // 4 + (2 << 20),
                             16 << 20), vmem_cap))

    if ctx_is_shared:
        ctx_spec = pl.BlockSpec((n_ctx, dim), lambda i: (0, 0))        # resident
    else:
        ctx_spec = pl.BlockSpec((class_tile, n_ctx, dim), lambda i: (i, 0, 0))
    if prefix_is_shared:
        prefix_in = pre_row
        prefix_spec = pl.BlockSpec((1, dim), lambda i: (0, 0))          # resident
    else:
        prefix_in = token_prefix
        prefix_spec = pl.BlockSpec((class_tile, 1, dim), lambda i: (i, 0, 0))

    kernel = _make_prompt_kernel(class_tile, n_ctx, dim,
                                 ctx_is_shared, prefix_is_shared)

    return pl.pallas_call(
        kernel,
        out_shape=jax.ShapeDtypeStruct((n_cls, total_len, dim), out_dtype),
        grid=(n_blocks,),
        in_specs=[
            ctx_spec,
            prefix_spec,
            pl.BlockSpec((class_tile, suf_len, dim), lambda i: (i, 0, 0)),
        ],
        out_specs=pl.BlockSpec((class_tile, total_len, dim), lambda i: (i, 0, 0)),
        compiler_params=pltpu.CompilerParams(
            dimension_semantics=("parallel",),
            vmem_limit_bytes=vmem_limit,
        ),
    )(ctx, prefix_in, token_suffix)


# TODO(synk): class_token_position in {'middle', 'front'} needs per-class ragged
# token lengths (name_lens); only the default 'end' path is a clean static-shape
# Pallas kernel, so it is the one implemented here.


if __name__ == "__main__":
    # Small, TPU-friendly synthetic shapes consistent with the module:
    #   n_cls classes, n_ctx learnable context tokens, ctx_dim embedding dim,
    #   total prompt length = 1 (SOS) + n_ctx + suf_len.
    n_cls, n_ctx, ctx_dim, suf_len = 16, 4, 128, 11
    dtype = jnp.bfloat16

    key = jax.random.PRNGKey(0)
    k_ctx, k_csc, k_pre, k_suf = jax.random.split(key, 4)

    ctx = (0.02 * jax.random.normal(k_ctx, (n_ctx, ctx_dim))).astype(dtype)
    ctx_csc = (0.02 * jax.random.normal(k_csc, (n_cls, n_ctx, ctx_dim))).astype(dtype)
    token_prefix = jax.random.normal(k_pre, (n_cls, 1, ctx_dim)).astype(dtype)
    token_suffix = jax.random.normal(k_suf, (n_cls, suf_len, ctx_dim)).astype(dtype)

    # --- generic (shared) context path (force the Pallas path for validation) ---
    prompts = jax.block_until_ready(
        prompt_learner_forward(ctx, token_prefix, token_suffix, force_pallas=True))
    ctx_b = jnp.broadcast_to(ctx[None, :, :], (n_cls, n_ctx, ctx_dim))
    ref = jnp.concatenate([token_prefix, ctx_b, token_suffix], axis=1)
    assert prompts.shape == (n_cls, 1 + n_ctx + suf_len, ctx_dim), prompts.shape
    assert prompts.dtype == dtype
    assert jnp.array_equal(prompts, ref)

    # --- class-specific context (CSC) path ---
    prompts_csc = jax.block_until_ready(
        prompt_learner_forward(ctx_csc, token_prefix, token_suffix, force_pallas=True))
    ref_csc = jnp.concatenate([token_prefix, ctx_csc, token_suffix], axis=1)
    assert jnp.array_equal(prompts_csc, ref_csc)

    # --- shared SOS prefix (CoOp's prefix rows are identical) + a class count
    #     whose divisors exercise the no-pad tile selection ---
    n2 = 12
    sos = jax.random.normal(jax.random.PRNGKey(1), (1, 1, ctx_dim)).astype(dtype)
    pre2 = jnp.broadcast_to(sos, (n2, 1, ctx_dim))
    suf2 = token_suffix[:n2]
    ctx2 = ctx_csc[:n2]
    prompts2 = jax.block_until_ready(
        prompt_learner_forward(ctx2, pre2, suf2,
                               prefix_is_shared=True, force_pallas=True))
    ref2 = jnp.concatenate([pre2, ctx2, suf2], axis=1)
    assert jnp.array_equal(prompts2, ref2)

    print("KERNEL_OK")
</pallas_src>

<mosaic_0001>
module attributes {stable_mosaic.version = 11 : i64} {
  func.func @prompt_kernel(%arg0: i32, %arg1: memref<4x128xbf16, #tpu.memory_space<vmem>>, %arg2: memref<16x1x128xbf16, #tpu.memory_space<vmem>>, %arg3: memref<16x11x128xbf16, #tpu.memory_space<vmem>>, %arg4: memref<16x16x128xbf16, #tpu.memory_space<vmem>>) attributes {dimension_semantics = [#tpu.dimension_semantics<parallel>], iteration_bounds = array<i64: 1>, scalar_prefetch = 0 : i64, scratch_operands = 0 : i64, tpu.core_type = #tpu.core_type<tc>, window_params = [{pipeline_mode = #tpu.pipeline_mode<synchronous>, transform_indices = @transform_0, window_bounds = array<i64: 4, 128>}, {transform_indices = @transform_1, window_bounds = array<i64: 16, 1, 128>}, {transform_indices = @transform_2, window_bounds = array<i64: 16, 11, 128>}, {transform_indices = @transform_3, window_bounds = array<i64: 16, 16, 128>}]} {
    %c0 = arith.constant 0 : index
    %c0_0 = arith.constant 0 : index
    %0 = vector.load %arg1[%c0, %c0_0] : memref<4x128xbf16, #tpu.memory_space<vmem>>, vector<4x128xbf16>
    %1 = vector.shape_cast %0 : vector<4x128xbf16> to vector<1x4x128xbf16>
    %2 = vector.shape_cast %1 : vector<1x4x128xbf16> to vector<1x4x128xbf16>
    %3 = vector.broadcast %2 : vector<1x4x128xbf16> to vector<16x4x128xbf16>
    %c0_1 = arith.constant 0 : index
    %c0_2 = arith.constant 0 : index
    %c0_3 = arith.constant 0 : index
    %4 = vector.load %arg2[%c0_1, %c0_2, %c0_3] : memref<16x1x128xbf16, #tpu.memory_space<vmem>>, vector<16x1x128xbf16>
    %c0_4 = arith.constant 0 : index
    %c0_5 = arith.constant 0 : index
    %c0_6 = arith.constant 0 : index
    %5 = vector.load %arg3[%c0_4, %c0_5, %c0_6] : memref<16x11x128xbf16, #tpu.memory_space<vmem>>, vector<16x11x128xbf16>
    %6 = tpu.concatenate %4, %3, %5 in 1 : vector<16x1x128xbf16>, vector<16x4x128xbf16>, vector<16x11x128xbf16> -> vector<16x16x128xbf16>
    %c0_7 = arith.constant 0 : index
    %c0_8 = arith.constant 0 : index
    %c0_9 = arith.constant 0 : index
    %7 = vector.load %arg4[%c0_7, %c0_8, %c0_9] : memref<16x16x128xbf16, #tpu.memory_space<vmem>>, vector<16x16x128xbf16>
    tpu.vector_store %arg4[%c0_7, %c0_8, %c0_9], %6 {strides = array<i32>} : memref<16x16x128xbf16, #tpu.memory_space<vmem>>, vector<16x16x128xbf16>,
    return
  }
  func.func @transform_0(%arg0: i32) -> (i32, i32) {
    %c0_i32 = arith.constant 0 : i32
    %c0_i32_0 = arith.constant 0 : i32
    %c0_i32_1 = arith.constant 0 : i32
    return %c0_i32, %c0_i32_0 : i32, i32
  }
  func.func @transform_1(%arg0: i32) -> (i32, i32, i32) {
    %c0_i32 = arith.constant 0 : i32
    %c0_i32_0 = arith.constant 0 : i32
    %c0_i32_1 = arith.constant 0 : i32
    return %arg0, %c0_i32, %c0_i32_0 : i32, i32, i32
  }
  func.func @transform_2(%arg0: i32) -> (i32, i32, i32) {
    %c0_i32 = arith.constant 0 : i32
    %c0_i32_0 = arith.constant 0 : i32
    %c0_i32_1 = arith.constant 0 : i32
    return %arg0, %c0_i32, %c0_i32_0 : i32, i32, i32
  }
  func.func @transform_3(%arg0: i32) -> (i32, i32, i32) {
    %c0_i32 = arith.constant 0 : i32
    %c0_i32_0 = arith.constant 0 : i32
    %c0_i32_1 = arith.constant 0 : i32
    return %arg0, %c0_i32, %c0_i32_0 : i32, i32, i32
  }
}

</mosaic_0001>

<llo_original>
// kernel: tpu_custom_call.1
$region0: #{tpu_custom_call.1}
  #allocation0 [shape = 'u32[]', space=smem, size = 0x4, offset = 0x4, fixed_abs, tag = 'smem constant byte address 0x4 - core index']
  #allocation1 [shape = 'u32[72,128]{1,0:T(1,128)}', space=vmem, size = 0x9000, scoped, tag = 'internal scratch']
  %s0 = inlined_call_operand.vmem [shape: bf16[4,128], index: 0, kind: input, shape index: {}]
  %s1 = inlined_call_operand.vmem [shape: bf16[16,1,128], index: 1, kind: input, shape index: {}]
  %s2 = inlined_call_operand.vmem [shape: bf16[16,11,128], index: 2, kind: input, shape index: {}]
  %s3 = inlined_call_operand.hbm [shape: bf16[16,16,128], index: 3, kind: output, shape index: {}]
  %s4 = sld [smem:[#allocation0]]
  $region22: #{tpu_custom_call.1} parent=0
    _
  %s6 = ssub.s32 1, %s4
  %s7 = scalar_select 0, %s6, %s4
  $region1: #{tpu_custom_call.1} parent=0
    #allocation2 [shape = 'u8[65536]{0}', space=vmem, size = 0x10000, scoped, tag = 'output window, operand 0, single buffered']
    #allocation3 [shape = 's32[1]{0}', space=sflag, size = 0x4, scoped, tag = 'scoped memory for tpu_custom_call.1']
    %8 = vsyncpa [#allocation3], 0
    // Predicated region
    $region2: #{tpu_custom_call.1} parent=1 // pred_check
      _
    $region3: #{tpu_custom_call.1} parent=1 // pred_check_branch
      %10 = sbr.rel (0) target = $region5
    $region4: #{tpu_custom_call.1} parent=1 // pred_region
      _
    $region5: #{tpu_custom_call.1} parent=1 // pred_fallthru
      _
    // Predicated region
    $region6: #{tpu_custom_call.1} parent=1 // pred_check
      _
    $region7: #{tpu_custom_call.1} parent=1 // pred_check_branch
      %12 = sbr.rel (0) target = $region9
    $region8: #{tpu_custom_call.1} parent=1 // pred_region
      _
    $region9: #{tpu_custom_call.1} parent=1 // pred_fallthru
      _
    // Predicated region
    $region10: #{tpu_custom_call.1} parent=1 // pred_check
      _
    $region11: #{tpu_custom_call.1} parent=1 // pred_check_branch
      %14 = sbr.rel (0) target = $region13
    $region12: #{tpu_custom_call.1} parent=1 // pred_region
      _
    $region13: #{tpu_custom_call.1} parent=1 // pred_fallthru
      _
    %v15 = vld [vmem:[%s0] sm:$0x3]
    %v16 = vld [vmem:[%s1] sm:$0x1]
    %v17 = vld [vmem:[%s1 + $0x1] sm:$0x1]
    %v18 = vld [vmem:[%s1 + $0x2] sm:$0x1]
    %v19 = vld [vmem:[%s1 + $0x3] sm:$0x1]
    %v20 = vld [vmem:[%s1 + $0x4] sm:$0x1]
    %v21 = vld [vmem:[%s1 + $0x5] sm:$0x1]
    %v22 = vld [vmem:[%s1 + $0x6] sm:$0x1]
    %v23 = vld [vmem:[%s1 + $0x7] sm:$0x1]
    %v24 = vld [vmem:[%s1 + $0x8] sm:$0x1]
    %v25 = vld [vmem:[%s1 + $0x9] sm:$0x1]
    %v26 = vld [vmem:[%s1 + $0xa] sm:$0x1]
    %v27 = vld [vmem:[%s1 + $0xb] sm:$0x1]
    %v28 = vld [vmem:[%s1 + $0xc] sm:$0x1]
    %v29 = vld [vmem:[%s1 + $0xd] sm:$0x1]
    %v30 = vld [vmem:[%s1 + $0xe] sm:$0x1]
    %v31 = vld [vmem:[%s1 + $0xf] sm:$0x1]
    %v32 = vld [vmem:[%s2] sm:$0xf]
    %v33 = vld [vmem:[%s2 + $0x4] sm:$0x3]
    %v34 = vld [vmem:[%s2 + $0x8] sm:$0xf]
    %v35 = vld [vmem:[%s2 + $0xc] sm:$0x3]
    %v36 = vld [vmem:[%s2 + $0x10] sm:$0xf]
    %v37 = vld [vmem:[%s2 + $0x14] sm:$0x3]
    %v38 = vld [vmem:[%s2 + $0x18] sm:$0xf]
    %v39 = vld [vmem:[%s2 + $0x1c] sm:$0x3]
    %v40 = vld [vmem:[%s2 + $0x20] sm:$0xf]
    %v41 = vld [vmem:[%s2 + $0x24] sm:$0x3]
    %v42 = vld [vmem:[%s2 + $0x28] sm:$0xf]
    %v43 = vld [vmem:[%s2 + $0x2c] sm:$0x3]
    %v44 = vld [vmem:[%s2 + $0x30] sm:$0xf]
    %v45 = vld [vmem:[%s2 + $0x34] sm:$0x3]
    %v46 = vld [vmem:[%s2 + $0x38] sm:$0xf]
    %v47 = vld [vmem:[%s2 + $0x3c] sm:$0x3]
    %v48 = vld [vmem:[%s2 + $0x40] sm:$0xf]
    %v49 = vld [vmem:[%s2 + $0x44] sm:$0x3]
    %v50 = vld [vmem:[%s2 + $0x48] sm:$0xf]
    %v51 = vld [vmem:[%s2 + $0x4c] sm:$0x3]
    %v52 = vld [vmem:[%s2 + $0x50] sm:$0xf]
    %v53 = vld [vmem:[%s2 + $0x54] sm:$0x3]
    %v54 = vld [vmem:[%s2 + $0x58] sm:$0xf]
    %v55 = vld [vmem:[%s2 + $0x5c] sm:$0x3]
    %v56 = vld [vmem:[%s2 + $0x60] sm:$0xf]
    %v57 = vld [vmem:[%s2 + $0x64] sm:$0x3]
    %v58 = vld [vmem:[%s2 + $0x68] sm:$0xf]
    %v59 = vld [vmem:[%s2 + $0x6c] sm:$0x3]
    %v60 = vld [vmem:[%s2 + $0x70] sm:$0xf]
    %v61 = vld [vmem:[%s2 + $0x74] sm:$0x3]
    %v62 = vld [vmem:[%s2 + $0x78] sm:$0xf]
    %v63 = vld [vmem:[%s2 + $0x7c] sm:$0x3]
    %65 = vst [vmem:[#allocation1] ss:$4 sm:$0xff] %v15
    %v66 = vld.sshfl [vmem:[#allocation1] sm:$0xff pattern:$0x73625140]
    %s67 = scalar_lea.vmem [#allocation1], 32
    %68 = vst [vmem:[%s67] ss:$4 sm:$0xff] %v15
    %v69 = vld.sshfl [vmem:[#allocation1 + $0x20] sm:$0xff pattern:$0x73625140]
    %70 = vst [vmem:[#allocation1] ss:$4 sm:$0xff] %v15
    %v71 = vld.sshfl [vmem:[#allocation1] sm:$0xff pattern:$0x73625140]
    %72 = vst [vmem:[%s67] ss:$4 sm:$0xff] %v15
    %v73 = vld.sshfl [vmem:[#allocation1 + $0x20] sm:$0xff pattern:$0x73625140]
    %74 = vst [vmem:[#allocation1] ss:$4 sm:$0xff] %v15
    %v75 = vld.sshfl [vmem:[#allocation1] sm:$0xff pattern:$0x73625140]
    %76 = vst [vmem:[%s67] ss:$4 sm:$0xff] %v15
    %v77 = vld.sshfl [vmem:[#allocation1 + $0x20] sm:$0xff pattern:$0x73625140]
    %78 = vst [vmem:[#allocation1] ss:$4 sm:$0xff] %v15
    %v79 = vld.sshfl [vmem:[#allocation1] sm:$0xff pattern:$0x73625140]
    %80 = vst [vmem:[%s67] ss:$4 sm:$0xff] %v15
    %v81 = vld.sshfl [vmem:[#allocation1 + $0x20] sm:$0xff pattern:$0x73625140]
    %82 = vst [vmem:[#allocation1] ss:$4 sm:$0xff] %v15
    %v83 = vld.sshfl [vmem:[#allocation1] sm:$0xff pattern:$0x73625140]
    %84 = vst [vmem:[%s67] ss:$4 sm:$0xff] %v15
    %v85 = vld.sshfl [vmem:[#allocation1 + $0x20] sm:$0xff pattern:$0x73625140]
    %86 = vst [vmem:[#allocation1] ss:$4 sm:$0xff] %v15
    %v87 = vld.sshfl [vmem:[#allocation1] sm:$0xff pattern:$0x73625140]
    %88 = vst [vmem:[%s67] ss:$4 sm:$0xff] %v15
    %v89 = vld.sshfl [vmem:[#allocation1 + $0x20] sm:$0xff pattern:$0x73625140]
    %90 = vst [vmem:[#allocation1] ss:$4 sm:$0xff] %v15
    %v91 = vld.sshfl [vmem:[#allocation1] sm:$0xff pattern:$0x73625140]
    %92 = vst [vmem:[%s67] ss:$4 sm:$0xff] %v15
    %v93 = vld.sshfl [vmem:[#allocation1 + $0x20] sm:$0xff pattern:$0x73625140]
    %94 = vst [vmem:[#allocation1] ss:$4 sm:$0xff] %v15
    %v95 = vld.sshfl [vmem:[#allocation1] sm:$0xff pattern:$0x73625140]
    %96 = vst [vmem:[%s67] ss:$4 sm:$0xff] %v15
    %v97 = vld.sshfl [vmem:[#allocation1 + $0x20] sm:$0xff pattern:$0x73625140]
    %v98 = vshrl.u32 %v66, 16
    %v100 = vrot.slane %v98, 7
    %v101 = vshll.u32 %v66, 16
    %v103 = vor.u32 %v100, %v101
    %v104 = vshrl.u32 %v69, 16
    %v106 = vrot.slane %v104, 7
    %v107 = vshll.u32 %v69, 16
    %v109 = vor.u32 %v106, %v107
    %v110 = vshrl.u32 %v71, 16
    %v112 = vrot.slane %v110, 7
    %v113 = vshll.u32 %v71, 16
    %v115 = vor.u32 %v112, %v113
    %v116 = vshrl.u32 %v73, 16
    %v118 = vrot.slane %v116, 7
    %v119 = vshll.u32 %v73, 16
    %v121 = vor.u32 %v118, %v119
    %v122 = vshrl.u32 %v75, 16
    %v124 = vrot.slane %v122, 7
    %v125 = vshll.u32 %v75, 16
    %v127 = vor.u32 %v124, %v125
    %v128 = vshrl.u32 %v77, 16
    %v130 = vrot.slane %v128, 7
    %v131 = vshll.u32 %v77, 16
    %v133 = vor.u32 %v130, %v131
    %v134 = vshrl.u32 %v79, 16
    %v136 = vrot.slane %v134, 7
    %v137 = vshll.u32 %v79, 16
    %v139 = vor.u32 %v136, %v137
    %v140 = vshrl.u32 %v81, 16
    %v142 = vrot.slane %v140, 7
    %v143 = vshll.u32 %v81, 16
    %v145 = vor.u32 %v142, %v143
    %v146 = vshrl.u32 %v83, 16
    %v148 = vrot.slane %v146, 7
    %v149 = vshll.u32 %v83, 16
    %v151 = vor.u32 %v148, %v149
    %v152 = vshrl.u32 %v85, 16
    %v154 = vrot.slane %v152, 7
    %v155 = vshll.u32 %v85, 16
    %v157 = vor.u32 %v154, %v155
    %v158 = vshrl.u32 %v87, 16
    %v160 = vrot.slane %v158, 7
    %v161 = vshll.u32 %v87, 16
    %v163 = vor.u32 %v160, %v161
    %v164 = vshrl.u32 %v89, 16
    %v166 = vrot.slane %v164, 7
    %v167 = vshll.u32 %v89, 16
    %v169 = vor.u32 %v166, %v167
    %v170 = vshrl.u32 %v91, 16
    %v172 = vrot.slane %v170, 7
    %v173 = vshll.u32 %v91, 16
    %v175 = vor.u32 %v172, %v173
    %v176 = vshrl.u32 %v93, 16
    %v178 = vrot.slane %v176, 7
    %v179 = vshll.u32 %v93, 16
    %v181 = vor.u32 %v178, %v179
    %v182 = vshrl.u32 %v95, 16
    %v184 = vrot.slane %v182, 7
    %v185 = vshll.u32 %v95, 16
    %v187 = vor.u32 %v184, %v185
    %v188 = vshrl.u32 %v97, 16
    %v190 = vrot.slane %v188, 7
    %v191 = vshll.u32 %v97, 16
    %v193 = vor.u32 %v190, %v191
    %v242 = vunpack.c.l.b16 %v32
    %v243 = vunpack.c.l.b16 %v33
    %v244 = vunpack.c.l.b16 %v34
    %v245 = vunpack.c.l.b16 %v35
    %v246 = vunpack.c.l.b16 %v36
    %v247 = vunpack.c.l.b16 %v37
    %v248 = vunpack.c.l.b16 %v38
    %v249 = vunpack.c.l.b16 %v39
    %v250 = vunpack.c.l.b16 %v40
    %v251 = vunpack.c.l.b16 %v41
    %v252 = vunpack.c.l.b16 %v42
    %v253 = vunpack.c.l.b16 %v43
    %v254 = vunpack.c.l.b16 %v44
    %v255 = vunpack.c.l.b16 %v45
    %v256 = vunpack.c.l.b16 %v46
    %v257 = vunpack.c.l.b16 %v47
    %v258 = vunpack.c.l.b16 %v48
    %v259 = vunpack.c.l.b16 %v49
    %v260 = vunpack.c.l.b16 %v50
    %v261 = vunpack.c.l.b16 %v51
    %v262 = vunpack.c.l.b16 %v52
    %v263 = vunpack.c.l.b16 %v53
    %v264 = vunpack.c.l.b16 %v54
    %v265 = vunpack.c.l.b16 %v55
    %v266 = vunpack.c.l.b16 %v56
    %v267 = vunpack.c.l.b16 %v57
    %v268 = vunpack.c.l.b16 %v58
    %v269 = vunpack.c.l.b16 %v59
    %v270 = vunpack.c.l.b16 %v60
    %v271 = vunpack.c.l.b16 %v61
    %v272 = vunpack.c.l.b16 %v62
    %v273 = vunpack.c.l.b16 %v63
    %v274 = vpack.c.b16 %v243, %v242
    %v275 = vpack.c.b16 %v245, %v244
    %v276 = vpack.c.b16 %v247, %v246
    %v277 = vpack.c.b16 %v249, %v248
    %v278 = vpack.c.b16 %v251, %v250
    %v279 = vpack.c.b16 %v253, %v252
    %v280 = vpack.c.b16 %v255, %v254
    %v281 = vpack.c.b16 %v257, %v256
    %v282 = vpack.c.b16 %v259, %v258
    %v283 = vpack.c.b16 %v261, %v260
    %v284 = vpack.c.b16 %v263, %v262
    %v285 = vpack.c.b16 %v265, %v264
    %v286 = vpack.c.b16 %v267, %v266
    %v287 = vpack.c.b16 %v269, %v268
    %v288 = vpack.c.b16 %v271, %v270
    %v289 = vpack.c.b16 %v273, %v272
    %v291 = vshrl.u32 %v274, 16
    %v293 = vrot.slane %v291, 5
    %v294 = vshll.u32 %v274, 16
    %v296 = vrot.slane %v294, 6
    %v297 = vor.u32 %v293, %v296
    %v299 = vshrl.u32 %v275, 16
    %v301 = vrot.slane %v299, 5
    %v302 = vshll.u32 %v275, 16
    %v304 = vrot.slane %v302, 6
    %v305 = vor.u32 %v301, %v304
    %v307 = vshrl.u32 %v276, 16
    %v309 = vrot.slane %v307, 5
    %v310 = vshll.u32 %v276, 16
    %v312 = vrot.slane %v310, 6
    %v313 = vor.u32 %v309, %v312
    %v315 = vshrl.u32 %v277, 16
    %v317 = vrot.slane %v315, 5
    %v318 = vshll.u32 %v277, 16
    %v320 = vrot.slane %v318, 6
    %v321 = vor.u32 %v317, %v320
    %v323 = vshrl.u32 %v278, 16
    %v325 = vrot.slane %v323, 5
    %v326 = vshll.u32 %v278, 16
    %v328 = vrot.slane %v326, 6
    %v329 = vor.u32 %v325, %v328
    %v331 = vshrl.u32 %v279, 16
    %v333 = vrot.slane %v331, 5
    %v334 = vshll.u32 %v279, 16
    %v336 = vrot.slane %v334, 6
    %v337 = vor.u32 %v333, %v336
    %v339 = vshrl.u32 %v280, 16
    %v341 = vrot.slane %v339, 5
    %v342 = vshll.u32 %v280, 16
    %v344 = vrot.slane %v342, 6
    %v345 = vor.u32 %v341, %v344
    %v347 = vshrl.u32 %v281, 16
    %v349 = vrot.slane %v347, 5
    %v350 = vshll.u32 %v281, 16
    %v352 = vrot.slane %v350, 6
    %v353 = vor.u32 %v349, %v352
    %v355 = vshrl.u32 %v282, 16
    %v357 = vrot.slane %v355, 5
    %v358 = vshll.u32 %v282, 16
    %v360 = vrot.slane %v358, 6
    %v361 = vor.u32 %v357, %v360
    %v363 = vshrl.u32 %v283, 16
    %v365 = vrot.slane %v363, 5
    %v366 = vshll.u32 %v283, 16
    %v368 = vrot.slane %v366, 6
    %v369 = vor.u32 %v365, %v368
    %v371 = vshrl.u32 %v284, 16
    %v373 = vrot.slane %v371, 5
    %v374 = vshll.u32 %v284, 16
    %v376 = vrot.slane %v374, 6
    %v377 = vor.u32 %v373, %v376
    %v379 = vshrl.u32 %v285, 16
    %v381 = vrot.slane %v379, 5
    %v382 = vshll.u32 %v285, 16
    %v384 = vrot.slane %v382, 6
    %v385 = vor.u32 %v381, %v384
    %v387 = vshrl.u32 %v286, 16
    %v389 = vrot.slane %v387, 5
    %v390 = vshll.u32 %v286, 16
    %v392 = vrot.slane %v390, 6
    %v393 = vor.u32 %v389, %v392
    %v395 = vshrl.u32 %v287, 16
    %v397 = vrot.slane %v395, 5
    %v398 = vshll.u32 %v287, 16
    %v400 = vrot.slane %v398, 6
    %v401 = vor.u32 %v397, %v400
    %v403 = vshrl.u32 %v288, 16
    %v405 = vrot.slane %v403, 5
    %v406 = vshll.u32 %v288, 16
    %v408 = vrot.slane %v406, 6
    %v409 = vor.u32 %v405, %v408
    %v411 = vshrl.u32 %v289, 16
    %v413 = vrot.slane %v411, 5
    %v414 = vshll.u32 %v289, 16
    %v416 = vrot.slane %v414, 6
    %v417 = vor.u32 %v413, %v416
    %vm434 = vcmask 1040384
    %vm435 = vsmask.f32 256
    %vm436 = vmand %vm434, %vm435
    %v437 = vsel %vm436, %v16, %v103
    %v438 = vsel %vm436, %v17, %v109
    %v439 = vsel %vm436, %v18, %v115
    %v440 = vsel %vm436, %v19, %v121
    %v441 = vsel %vm436, %v20, %v127
    %v442 = vsel %vm436, %v21, %v133
    %v443 = vsel %vm436, %v22, %v139
    %v444 = vsel %vm436, %v23, %v145
    %v445 = vsel %vm436, %v24, %v151
    %v446 = vsel %vm436, %v25, %v157
    %v447 = vsel %vm436, %v26, %v163
    %v448 = vsel %vm436, %v27, %v169
    %v449 = vsel %vm436, %v28, %v175
    %v450 = vsel %vm436, %v29, %v181
    %v451 = vsel %vm436, %v30, %v187
    %v452 = vsel %vm436, %v31, %v193
    %vm453 = vcmask 1042432
    %vm454 = vsmask.f32 2304
    %vm455 = vmand %vm453, %vm454
    %v456 = vsel %vm455, %v437, %v297
    %v457 = vsel %vm455, %v438, %v305
    %v458 = vsel %vm455, %v439, %v313
    %v459 = vsel %vm455, %v440, %v321
    %v460 = vsel %vm455, %v441, %v329
    %v461 = vsel %vm455, %v442, %v337
    %v462 = vsel %vm455, %v443, %v345
    %v463 = vsel %vm455, %v444, %v353
    %v464 = vsel %vm455, %v445, %v361
    %v465 = vsel %vm455, %v446, %v369
    %v466 = vsel %vm455, %v447, %v377
    %v467 = vsel %vm455, %v448, %v385
    %v468 = vsel %vm455, %v449, %v393
    %v469 = vsel %vm455, %v450, %v401
    %v470 = vsel %vm455, %v451, %v409
    %v471 = vsel %vm455, %v452, %v417
    %v488 = vunpack.c.l.b16 %v456
    %v489 = vunpack.c.h.b16 %v456
    %v490 = vunpack.c.l.b16 %v457
    %v491 = vunpack.c.h.b16 %v457
    %v492 = vunpack.c.l.b16 %v458
    %v493 = vunpack.c.h.b16 %v458
    %v494 = vunpack.c.l.b16 %v459
    %v495 = vunpack.c.h.b16 %v459
    %v496 = vunpack.c.l.b16 %v460
    %v497 = vunpack.c.h.b16 %v460
    %v498 = vunpack.c.l.b16 %v461
    %v499 = vunpack.c.h.b16 %v461
    %v500 = vunpack.c.l.b16 %v462
    %v501 = vunpack.c.h.b16 %v462
    %v502 = vunpack.c.l.b16 %v463
    %v503 = vunpack.c.h.b16 %v463
    %v504 = vunpack.c.l.b16 %v464
    %v505 = vunpack.c.h.b16 %v464
    %v506 = vunpack.c.l.b16 %v465
    %v507 = vunpack.c.h.b16 %v465
    %v508 = vunpack.c.l.b16 %v466
    %v509 = vunpack.c.h.b16 %v466
    %v510 = vunpack.c.l.b16 %v467
    %v511 = vunpack.c.h.b16 %v467
    %v512 = vunpack.c.l.b16 %v468
    %v513 = vunpack.c.h.b16 %v468
    %v514 = vunpack.c.l.b16 %v469
    %v515 = vunpack.c.h.b16 %v469
    %v516 = vunpack.c.l.b16 %v470
    %v517 = vunpack.c.h.b16 %v470
    %v518 = vunpack.c.l.b16 %v471
    %v519 = vunpack.c.h.b16 %v471
    %v520 = vpack.c.b16 %v488, %v488
    %v521 = vpack.c.b16 %v489, %v489
    %v522 = vpack.c.b16 %v490, %v490
    %v523 = vpack.c.b16 %v491, %v491
    %v524 = vpack.c.b16 %v492, %v492
    %v525 = vpack.c.b16 %v493, %v493
    %v526 = vpack.c.b16 %v494, %v494
    %v527 = vpack.c.b16 %v495, %v495
    %v528 = vpack.c.b16 %v496, %v496
    %v529 = vpack.c.b16 %v497, %v497
    %v530 = vpack.c.b16 %v498, %v498
    %v531 = vpack.c.b16 %v499, %v499
    %v532 = vpack.c.b16 %v500, %v500
    %v533 = vpack.c.b16 %v501, %v501
    %v534 = vpack.c.b16 %v502, %v502
    %v535 = vpack.c.b16 %v503, %v503
    %v536 = vpack.c.b16 %v504, %v504
    %v537 = vpack.c.b16 %v505, %v505
    %v538 = vpack.c.b16 %v506, %v506
    %v539 = vpack.c.b16 %v507, %v507
    %v540 = vpack.c.b16 %v508, %v508
    %v541 = vpack.c.b16 %v509, %v509
    %v542 = vpack.c.b16 %v510, %v510
    %v543 = vpack.c.b16 %v511, %v511
    %v544 = vpack.c.b16 %v512, %v512
    %v545 = vpack.c.b16 %v513, %v513
    %v546 = vpack.c.b16 %v514, %v514
    %v547 = vpack.c.b16 %v515, %v515
    %v548 = vpack.c.b16 %v516, %v516
    %v549 = vpack.c.b16 %v517, %v517
    %v550 = vpack.c.b16 %v518, %v518
    %v551 = vpack.c.b16 %v519, %v519
    %584 = vst [vmem:[#allocation2] sm:$0xf] %v520
    %585 = vst [vmem:[#allocation2 + $0x4] sm:$0xf] %v521
    %586 = vst [vmem:[#allocation2 + $0x8] sm:$0xf] %v522
    %587 = vst [vmem:[#allocation2 + $0xc] sm:$0xf] %v523
    %588 = vst [vmem:[#allocation2 + $0x10] sm:$0xf] %v524
    %589 = vst [vmem:[#allocation2 + $0x14] sm:$0xf] %v525
    %590 = vst [vmem:[#allocation2 + $0x18] sm:$0xf] %v526
    %591 = vst [vmem:[#allocation2 + $0x1c] sm:$0xf] %v527
    %592 = vst [vmem:[#allocation2 + $0x20] sm:$0xf] %v528
    %593 = vst [vmem:[#allocation2 + $0x24] sm:$0xf] %v529
    %594 = vst [vmem:[#allocation2 + $0x28] sm:$0xf] %v530
    %595 = vst [vmem:[#allocation2 + $0x2c] sm:$0xf] %v531
    %596 = vst [vmem:[#allocation2 + $0x30] sm:$0xf] %v532
    %597 = vst [vmem:[#allocation2 + $0x34] sm:$0xf] %v533
    %598 = vst [vmem:[#allocation2 + $0x38] sm:$0xf] %v534
    %599 = vst [vmem:[#allocation2 + $0x3c] sm:$0xf] %v535
    %600 = vst [vmem:[#allocation2 + $0x40] sm:$0xf] %v536
    %601 = vst [vmem:[#allocation2 + $0x44] sm:$0xf] %v537
    %602 = vst [vmem:[#allocation2 + $0x48] sm:$0xf] %v538
    %603 = vst [vmem:[#allocation2 + $0x4c] sm:$0xf] %v539
    %604 = vst [vmem:[#allocation2 + $0x50] sm:$0xf] %v540
    %605 = vst [vmem:[#allocation2 + $0x54] sm:$0xf] %v541
    %606 = vst [vmem:[#allocation2 + $0x58] sm:$0xf] %v542
    %607 = vst [vmem:[#allocation2 + $0x5c] sm:$0xf] %v543
    %608 = vst [vmem:[#allocation2 + $0x60] sm:$0xf] %v544
    %609 = vst [vmem:[#allocation2 + $0x64] sm:$0xf] %v545
    %610 = vst [vmem:[#allocation2 + $0x68] sm:$0xf] %v546
    %611 = vst [vmem:[#allocation2 + $0x6c] sm:$0xf] %v547
    %612 = vst [vmem:[#allocation2 + $0x70] sm:$0xf] %v548
    %613 = vst [vmem:[#allocation2 + $0x74] sm:$0xf] %v549
    %614 = vst [vmem:[#allocation2 + $0x78] sm:$0xf] %v550
    %615 = vst [vmem:[#allocation2 + $0x7c] sm:$0xf] %v551
    // Predicated region
    $region14: #{tpu_custom_call.1} parent=1 // pred_check
      _
    $region15: #{tpu_custom_call.1} parent=1 // pred_check_branch
      %617 = sbr.rel (0) target = $region17
    $region16: #{tpu_custom_call.1} parent=1 // pred_region
      %619 = vsyncadd [#allocation3], 0
      %s620 = sshll.u32 [#allocation2], 4
      %s621 = int_to_ptr.vmem [resolvable:$true] %s620
      %s622 = sshll.u32 %s3, 4
      %s623 = int_to_ptr.hbm [resolvable:$true] %s622
      %628 = dma.vmem_to_hbm [thread:$0]  %s621, 2048, %s623, [#allocation3], 64, 64, 4
    $region17: #{tpu_custom_call.1} parent=1 // pred_fallthru
      _
    // Predicated region
    $region18: #{tpu_custom_call.1} parent=1 // pred_check
      _
    $region19: #{tpu_custom_call.1} parent=1 // pred_check_branch
      %630 = sbr.rel (0) target = $region21
    $region20: #{tpu_custom_call.1} parent=1 // pred_region
      %632 = dma.done [#allocation3], 2048
    $region21: #{tpu_custom_call.1} parent=1 // pred_fallthru
      _
    %633 = vsyncpa [#allocation3], 1

</llo_original>
